<compile_context>
chip_gen: v7x
topology: tpu7x:2x2x1
jax: 0.10.0
libtpu: 0.0.40
codegen_flags: <defaults>
</compile_context>

<pallas_src>
import math

import jax
import jax.numpy as jnp
from jax.experimental import pallas as pl
from jax.experimental.pallas import tpu as pltpu


# ---------------------------------------------------------------------------
# Kernel 1: per-(batch, head, q_tile) QKV projection + attention.
# Rotary + 1/sqrt(head_dim) are already folded into the Q/K weight slabs.
# ---------------------------------------------------------------------------
def _attn_head_kernel(hs_q_ref, hs_kv_ref,
                      wq_ref, bq_ref, wk_ref, bk_ref, wv_ref, bv_ref,
                      mask_ref, out_ref, k_scr, v_scr):
    qi = pl.program_id(2)

    # K / V for this (batch, head) are computed once and reused across q-tiles.
    @pl.when(qi == 0)
    def _():
        hs_kv = hs_kv_ref[0]                                              # (S, E) bf16
        k = jnp.dot(hs_kv, wk_ref[0], preferred_element_type=jnp.float32) + bk_ref[0]
        v = jnp.dot(hs_kv, wv_ref[0], preferred_element_type=jnp.float32) + bv_ref[0]
        k_scr[...] = k
        v_scr[...] = v

    # Q projection; rotary + score scale already folded into wq/bq.
    q = (jnp.dot(hs_q_ref[0], wq_ref[0], preferred_element_type=jnp.float32)
         + bq_ref[0])                                                     # (tq, D) f32

    # Scores: single full-depth (K = head_dim) MXU contraction, bf16 operands.
    scores = jax.lax.dot_general(
        q.astype(jnp.bfloat16), k_scr[...].astype(jnp.bfloat16),
        dimension_numbers=(((1,), (1,)), ((), ())),
        preferred_element_type=jnp.float32)                               # (tq, S)
    scores = scores + mask_ref[...]

    # Softmax in f32; divide moved to the EUP via approx reciprocal.
    m = jnp.max(scores, axis=-1, keepdims=True)
    p = jnp.exp(scores - m)
    denom = jnp.sum(p, axis=-1, keepdims=True)
    p = p * pl.reciprocal(denom, approx=True)

    attn = jnp.dot(p.astype(jnp.bfloat16), v_scr[...].astype(jnp.bfloat16),
                   preferred_element_type=jnp.float32)                    # (tq, D)
    out_ref[0, 0] = attn.astype(out_ref.dtype)


# ---------------------------------------------------------------------------
# Kernel 2: output projection, accumulated over the ("arbitrary") head axis.
# ---------------------------------------------------------------------------
def _out_proj_kernel(attn_ref, wo_ref, bo_ref, out_ref, acc_ref):
    h = pl.program_id(1)

    @pl.when(h == 0)
    def _():
        acc_ref[...] = jnp.zeros_like(acc_ref)

    acc_ref[...] += jnp.dot(attn_ref[0, 0].astype(jnp.bfloat16), wo_ref[0],
                            preferred_element_type=jnp.float32)

    @pl.when(h == pl.num_programs(1) - 1)
    def _():
        out_ref[0] = (acc_ref[...] + bo_ref[...]).astype(out_ref.dtype)


# ---------------------------------------------------------------------------
# Wrapper-side constant parameter preprocessing (trace-time).
# ---------------------------------------------------------------------------
def _fold_params(freqs_cis, wq, bq, wk, bk, wv, bv, wo, bo,
                 num_heads, head_dim, seq_len, compute_dtype):
    """Fold the (position-independent, per-head) rotary map and the 1/sqrt(D)
    score scale into the Q/K projection parameters, and reshape all weights
    into per-head slabs for head-sliced BlockSpecs."""
    H, D = num_heads, head_dim
    hd2 = D // 2
    E = H * D
    scale = 1.0 / math.sqrt(D)

    # Reference broadcast: freqs row index aligns with the HEAD axis.
    fr = freqs_cis[:seq_len, :, 0].astype(jnp.float32)     # (H, hd2)
    fi = freqs_cis[:seq_len, :, 1].astype(jnp.float32)     # (H, hd2)

    def fold_qk(w, b, apply_scale):
        wt = w.T.astype(jnp.float32).reshape(E, H, hd2, 2)  # (E_in, H, hd2, even/odd)
        we, wodd = wt[..., 0], wt[..., 1]
        w_rot = jnp.concatenate([we * fr - wodd * fi,       # "real" half
                                 we * fi + wodd * fr],      # "imag" half
                                axis=-1)                     # (E_in, H, D)
        bt = b.astype(jnp.float32).reshape(H, hd2, 2)
        be, bodd = bt[..., 0], bt[..., 1]
        b_rot = jnp.concatenate([be * fr - bodd * fi,
                                 be * fi + bodd * fr], axis=-1)   # (H, D)
        if apply_scale:
            w_rot = w_rot * scale
            b_rot = b_rot * scale
        return (jnp.transpose(w_rot, (1, 0, 2)).astype(compute_dtype),  # (H, E, D)
                b_rot.reshape(H, 1, D).astype(jnp.float32))             # (H, 1, D)

    wq_h, bq_h = fold_qk(wq, bq, apply_scale=True)
    wk_h, bk_h = fold_qk(wk, bk, apply_scale=False)
    wv_h = jnp.transpose(wv.T.astype(jnp.float32).reshape(E, H, D),
                         (1, 0, 2)).astype(compute_dtype)               # (H, E, D)
    bv_h = bv.astype(jnp.float32).reshape(H, 1, D)                      # (H, 1, D)
    wo_h = wo.T.astype(jnp.float32).reshape(H, D, E).astype(compute_dtype)  # (H, D, E)
    bo_2 = bo.astype(jnp.float32).reshape(1, E)                         # (1, E)
    return wq_h, bq_h, wk_h, bk_h, wv_h, bv_h, wo_h, bo_2


def attention_pallas(hidden_states, freqs_cis, mask,
                     wq, bq, wk, bk, wv, bv, wo, bo, num_heads,
                     *, q_tile=None, compute_dtype=jnp.bfloat16):
    B, S, E = hidden_states.shape
    H = num_heads
    D = E // H
    assert S == H, ("the reference apply_rotary_emb broadcasts freqs_cis against "
                    "the head axis, which requires seq_len == num_heads")

    if q_tile is None:
        q_tile = S if S <= 128 else 128
    assert S % q_tile == 0 and (q_tile == S or q_tile % 8 == 0)
    n_q_tiles = S // q_tile

    (wq_h, bq_h, wk_h, bk_h, wv_h, bv_h, wo_h, bo_2) = _fold_params(
        freqs_cis, wq, bq, wk, bk, wv, bv, wo, bo, H, D, S, compute_dtype)

    hs_c = hidden_states.astype(compute_dtype)
    if mask is None:
        mask_arr = jnp.zeros((S, S), jnp.float32)
    else:
        mask_arr = jnp.broadcast_to(mask, (S, S)).astype(jnp.float32)

    # ---- per-head attention: grid (batch, head, q_tile) ---------------------
    attn_heads = pl.pallas_call(
        _attn_head_kernel,
        out_shape=jax.ShapeDtypeStruct((B, H, S, D), jnp.float32),
        grid_spec=pltpu.PrefetchScalarGridSpec(
            num_scalar_prefetch=0,
            grid=(B, H, n_q_tiles),
            in_specs=[
                pl.BlockSpec((1, q_tile, E), lambda b, h, qi: (b, qi, 0)),  # hs (Q rows)
                pl.BlockSpec((1, S, E),      lambda b, h, qi: (b, 0, 0)),   # hs (K/V rows)
                pl.BlockSpec((1, E, D),      lambda b, h, qi: (h, 0, 0)),   # Wq (rot+scale)
                pl.BlockSpec((1, 1, D),      lambda b, h, qi: (h, 0, 0)),   # bq (rot+scale)
                pl.BlockSpec((1, E, D),      lambda b, h, qi: (h, 0, 0)),   # Wk (rot)
                pl.BlockSpec((1, 1, D),      lambda b, h, qi: (h, 0, 0)),   # bk (rot)
                pl.BlockSpec((1, E, D),      lambda b, h, qi: (h, 0, 0)),   # Wv
                pl.BlockSpec((1, 1, D),      lambda b, h, qi: (h, 0, 0)),   # bv
                pl.BlockSpec((q_tile, S),    lambda b, h, qi: (qi, 0)),     # additive mask
            ],
            out_specs=pl.BlockSpec((1, 1, q_tile, D),
                                   lambda b, h, qi: (b, h, qi, 0)),
            scratch_shapes=[pltpu.VMEM((S, D), jnp.float32),   # K (per batch, head)
                            pltpu.VMEM((S, D), jnp.float32)],  # V (per batch, head)
        ),
        compiler_params=pltpu.CompilerParams(
            dimension_semantics=("parallel", "parallel", "arbitrary")),
    )(hs_c, hs_c, wq_h, bq_h, wk_h, bk_h, wv_h, bv_h, mask_arr)

    # ---- output projection: accumulate head contributions -------------------
    out = pl.pallas_call(
        _out_proj_kernel,
        out_shape=jax.ShapeDtypeStruct((B, S, E), jnp.float32),
        grid_spec=pltpu.PrefetchScalarGridSpec(
            num_scalar_prefetch=0,
            grid=(B, H),
            in_specs=[
                pl.BlockSpec((1, 1, S, D), lambda b, h: (b, h, 0, 0)),  # per-head attn
                pl.BlockSpec((1, D, E),    lambda b, h: (h, 0, 0)),     # Wo head slab
                pl.BlockSpec((1, E),       lambda b, h: (0, 0)),        # bo
            ],
            out_specs=pl.BlockSpec((1, S, E), lambda b, h: (b, 0, 0)),
            scratch_shapes=[pltpu.VMEM((S, E), jnp.float32)],
        ),
        compiler_params=pltpu.CompilerParams(
            dimension_semantics=("parallel", "arbitrary")),
    )(attn_heads, wo_h, bo_2)
    return out


# ---------------------------------------------------------------------------
# Pure-JAX transliteration of the PyTorch module for verification.
# ---------------------------------------------------------------------------
def attention_ref(hs, freqs_cis, mask, wq, bq, wk, bk, wv, bv, wo, bo, num_heads):
    B, S, E = hs.shape
    D = E // num_heads

    def rot(x):
        xr = x.reshape(B, S, num_heads, D // 2, 2)
        x_real, x_imag = xr[..., 0], xr[..., 1]
        fc = freqs_cis[:S][None, None]                     # (1,1,S,D//2,2)
        fcr, fci = fc[..., 0], fc[..., 1]
        rr = x_real * fcr - x_imag * fci
        ri = x_real * fci + x_imag * fcr
        return jnp.concatenate([rr, ri], axis=-1)          # (B,S,H,D)

    q = (hs @ wq.T + bq).reshape(B, S, num_heads, D)
    k = (hs @ wk.T + bk).reshape(B, S, num_heads, D)
    v = (hs @ wv.T + bv).reshape(B, S, num_heads, D)
    q, k = rot(q), rot(k)
    aw = jnp.einsum('bqhd,bkhd->bhqk', q, k) / math.sqrt(D)
    if mask is not None:
        aw = aw + mask
    p = jax.nn.softmax(aw, axis=-1)
    ao = jnp.einsum('bhqk,bkhd->bqhd', p, v).reshape(B, S, E)
    return ao @ wo.T + bo


if __name__ == "__main__":
    B, H, D = 2, 8, 8
    S = H                      # required by the reference rotary broadcast
    E = H * D

    key = jax.random.PRNGKey(0)
    ks = jax.random.split(key, 9)
    hs = jax.random.normal(ks[0], (B, S, E), dtype=jnp.float32)
    wq = 0.05 * jax.random.normal(ks[1], (E, E), dtype=jnp.float32)
    bq = 0.05 * jax.random.normal(ks[2], (E,), dtype=jnp.float32)
    wk = 0.05 * jax.random.normal(ks[3], (E, E), dtype=jnp.float32)
    bk = 0.05 * jax.random.normal(ks[4], (E,), dtype=jnp.float32)
    wv = 0.05 * jax.random.normal(ks[5], (E, E), dtype=jnp.float32)
    bv = 0.05 * jax.random.normal(ks[6], (E,), dtype=jnp.float32)
    wo = 0.05 * jax.random.normal(ks[7], (E, E), dtype=jnp.float32)
    bo = 0.05 * jax.random.normal(ks[8], (E,), dtype=jnp.float32)

    # rotary table: (max_seq, D//2, 2) with [..., 0]=cos, [..., 1]=sin
    pos = jnp.arange(S, dtype=jnp.float32)[:, None]
    inv_freq = 1.0 / (10000.0 ** (jnp.arange(0, D, 2, dtype=jnp.float32) / D))
    ang = pos * inv_freq[None, :]
    freqs_cis = jnp.stack([jnp.cos(ang), jnp.sin(ang)], axis=-1)   # (S, D//2, 2)

    # additive causal mask (S, S)
    idx = jnp.arange(S)
    mask = jnp.where(idx[None, :] <= idx[:, None], 0.0, -1e9).astype(jnp.float32)

    out = attention_pallas(hs, freqs_cis, mask, wq, bq, wk, bk, wv, bv, wo, bo, H)
    out = jax.block_until_ready(out)

    ref = attention_ref(hs, freqs_cis, mask, wq, bq, wk, bk, wv, bv, wo, bo, H)
    assert out.shape == (B, S, E)
    # bf16 MXU operands (with f32 accumulation) give ~1e-3-level absolute error
    # versus the pure-f32 reference; 2e-2 leaves a comfortable margin.
    assert jnp.allclose(out, ref, rtol=2e-2, atol=2e-2), \
        float(jnp.max(jnp.abs(out - ref)))

    print("KERNEL_OK")
</pallas_src>

<mosaic_0001>
module attributes {stable_mosaic.version = 11 : i64} {
  func.func @_attn_head_kernel(%arg0: i32, %arg1: i32, %arg2: i32, %arg3: memref<1x8x64xbf16, #tpu.memory_space<vmem>>, %arg4: memref<1x8x64xbf16, #tpu.memory_space<vmem>>, %arg5: memref<1x64x8xbf16, #tpu.memory_space<vmem>>, %arg6: memref<1x1x8xf32, #tpu.memory_space<vmem>>, %arg7: memref<1x64x8xbf16, #tpu.memory_space<vmem>>, %arg8: memref<1x1x8xf32, #tpu.memory_space<vmem>>, %arg9: memref<1x64x8xbf16, #tpu.memory_space<vmem>>, %arg10: memref<1x1x8xf32, #tpu.memory_space<vmem>>, %arg11: memref<8x8xf32, #tpu.memory_space<vmem>>, %arg12: memref<1x1x8x8xf32, #tpu.memory_space<vmem>>, %arg13: memref<8x8xf32, #tpu.memory_space<vmem>>, %arg14: memref<8x8xf32, #tpu.memory_space<vmem>>) attributes {dimension_semantics = [#tpu.dimension_semantics<parallel>, #tpu.dimension_semantics<parallel>, #tpu.dimension_semantics<arbitrary>], iteration_bounds = array<i64: 2, 8, 1>, scalar_prefetch = 0 : i64, scratch_operands = 2 : i64, tpu.core_type = #tpu.core_type<tc>, window_params = [{transform_indices = @transform_0, window_bounds = array<i64: 1, 8, 64>}, {transform_indices = @transform_1, window_bounds = array<i64: 1, 8, 64>}, {transform_indices = @transform_2, window_bounds = array<i64: 1, 64, 8>}, {transform_indices = @transform_3, window_bounds = array<i64: 1, 1, 8>}, {transform_indices = @transform_4, window_bounds = array<i64: 1, 64, 8>}, {transform_indices = @transform_5, window_bounds = array<i64: 1, 1, 8>}, {transform_indices = @transform_6, window_bounds = array<i64: 1, 64, 8>}, {transform_indices = @transform_7, window_bounds = array<i64: 1, 1, 8>}, {transform_indices = @transform_8, window_bounds = array<i64: 8, 8>}, {transform_indices = @transform_9, window_bounds = array<i64: 1, 1, 8, 8>}]} {
    %c0_i32 = arith.constant 0 : i32
    %0 = arith.cmpi eq, %arg2, %c0_i32 : i32
    %1 = arith.extui %0 : i1 to i32
    %c0_i32_0 = arith.constant 0 : i32
    %2 = arith.cmpi ne, %1, %c0_i32_0 : i32
    scf.if %2 {
      %c0_23 = arith.constant 0 : index
      %c0_24 = arith.constant 0 : index
      %c0_25 = arith.constant 0 : index
      %35 = vector.load %arg4[%c0_23, %c0_24, %c0_25] : memref<1x8x64xbf16, #tpu.memory_space<vmem>>, vector<1x8x64xbf16>
      %36 = vector.shape_cast %35 : vector<1x8x64xbf16> to vector<8x64xbf16>
      %c0_26 = arith.constant 0 : index
      %c0_27 = arith.constant 0 : index
      %c0_28 = arith.constant 0 : index
      %37 = vector.load %arg7[%c0_26, %c0_27, %c0_28] : memref<1x64x8xbf16, #tpu.memory_space<vmem>>, vector<1x64x8xbf16>
      %38 = vector.shape_cast %37 : vector<1x64x8xbf16> to vector<64x8xbf16>
      %cst_29 = arith.constant dense<0.000000e+00> : vector<8x8xf32>
      %39 = tpu.matmul %36, %38, %cst_29 {dimension_numbers = #tpu.dot_dimension_numbers<[1], [0], [0], [1], [0, 0, 1, 1], [], []>} : vector<8x64xbf16>, vector<64x8xbf16>, vector<8x8xf32> -> vector<8x8xf32>
      %c0_30 = arith.constant 0 : index
      %c0_31 = arith.constant 0 : index
      %c0_32 = arith.constant 0 : index
      %40 = vector.load %arg8[%c0_30, %c0_31, %c0_32] : memref<1x1x8xf32, #tpu.memory_space<vmem>>, vector<1x1x8xf32>
      %41 = vector.shape_cast %40 : vector<1x1x8xf32> to vector<1x8xf32>
      %42 = vector.broadcast %41 : vector<1x8xf32> to vector<8x8xf32>
      %43 = arith.addf %39, %42 : vector<8x8xf32>
      %c0_33 = arith.constant 0 : index
      %c0_34 = arith.constant 0 : index
      %c0_35 = arith.constant 0 : index
      %44 = vector.load %arg9[%c0_33, %c0_34, %c0_35] : memref<1x64x8xbf16, #tpu.memory_space<vmem>>, vector<1x64x8xbf16>
      %45 = vector.shape_cast %44 : vector<1x64x8xbf16> to vector<64x8xbf16>
      %cst_36 = arith.constant dense<0.000000e+00> : vector<8x8xf32>
      %46 = tpu.matmul %36, %45, %cst_36 {dimension_numbers = #tpu.dot_dimension_numbers<[1], [0], [0], [1], [0, 0, 1, 1], [], []>} : vector<8x64xbf16>, vector<64x8xbf16>, vector<8x8xf32> -> vector<8x8xf32>
      %c0_37 = arith.constant 0 : index
      %c0_38 = arith.constant 0 : index
      %c0_39 = arith.constant 0 : index
      %47 = vector.load %arg10[%c0_37, %c0_38, %c0_39] : memref<1x1x8xf32, #tpu.memory_space<vmem>>, vector<1x1x8xf32>
      %48 = vector.shape_cast %47 : vector<1x1x8xf32> to vector<1x8xf32>
      %49 = vector.broadcast %48 : vector<1x8xf32> to vector<8x8xf32>
      %50 = arith.addf %46, %49 : vector<8x8xf32>
      %c0_40 = arith.constant 0 : index
      %c0_41 = arith.constant 0 : index
      %51 = vector.load %arg13[%c0_40, %c0_41] : memref<8x8xf32, #tpu.memory_space<vmem>>, vector<8x8xf32>
      tpu.vector_store %arg13[%c0_40, %c0_41], %43 {strides = array<i32>} : memref<8x8xf32, #tpu.memory_space<vmem>>, vector<8x8xf32>,
      %c0_42 = arith.constant 0 : index
      %c0_43 = arith.constant 0 : index
      %52 = vector.load %arg14[%c0_42, %c0_43] : memref<8x8xf32, #tpu.memory_space<vmem>>, vector<8x8xf32>
      tpu.vector_store %arg14[%c0_42, %c0_43], %50 {strides = array<i32>} : memref<8x8xf32, #tpu.memory_space<vmem>>, vector<8x8xf32>,
    } else {
    }
    %c0 = arith.constant 0 : index
    %c0_1 = arith.constant 0 : index
    %c0_2 = arith.constant 0 : index
    %3 = vector.load %arg3[%c0, %c0_1, %c0_2] : memref<1x8x64xbf16, #tpu.memory_space<vmem>>, vector<1x8x64xbf16>
    %4 = vector.shape_cast %3 : vector<1x8x64xbf16> to vector<8x64xbf16>
    %c0_3 = arith.constant 0 : index
    %c0_4 = arith.constant 0 : index
    %c0_5 = arith.constant 0 : index
    %5 = vector.load %arg5[%c0_3, %c0_4, %c0_5] : memref<1x64x8xbf16, #tpu.memory_space<vmem>>, vector<1x64x8xbf16>
    %6 = vector.shape_cast %5 : vector<1x64x8xbf16> to vector<64x8xbf16>
    %cst = arith.constant dense<0.000000e+00> : vector<8x8xf32>
    %7 = tpu.matmul %4, %6, %cst {dimension_numbers = #tpu.dot_dimension_numbers<[1], [0], [0], [1], [0, 0, 1, 1], [], []>} : vector<8x64xbf16>, vector<64x8xbf16>, vector<8x8xf32> -> vector<8x8xf32>
    %c0_6 = arith.constant 0 : index
    %c0_7 = arith.constant 0 : index
    %c0_8 = arith.constant 0 : index
    %8 = vector.load %arg6[%c0_6, %c0_7, %c0_8] : memref<1x1x8xf32, #tpu.memory_space<vmem>>, vector<1x1x8xf32>
    %9 = vector.shape_cast %8 : vector<1x1x8xf32> to vector<1x8xf32>
    %10 = vector.broadcast %9 : vector<1x8xf32> to vector<8x8xf32>
    %11 = arith.addf %7, %10 : vector<8x8xf32>
    %12 = arith.truncf %11 : vector<8x8xf32> to vector<8x8xbf16>
    %c0_9 = arith.constant 0 : index
    %c0_10 = arith.constant 0 : index
    %13 = vector.load %arg13[%c0_9, %c0_10] : memref<8x8xf32, #tpu.memory_space<vmem>>, vector<8x8xf32>
    %14 = arith.truncf %13 : vector<8x8xf32> to vector<8x8xbf16>
    %cst_11 = arith.constant dense<0.000000e+00> : vector<8x8xf32>
    %15 = tpu.matmul %12, %14, %cst_11 {dimension_numbers = #tpu.dot_dimension_numbers<[1], [1], [0], [0], [0, 0, 1, 0], [], []>} : vector<8x8xbf16>, vector<8x8xbf16>, vector<8x8xf32> -> vector<8x8xf32>
    %c0_12 = arith.constant 0 : index
    %c0_13 = arith.constant 0 : index
    %16 = vector.load %arg11[%c0_12, %c0_13] : memref<8x8xf32, #tpu.memory_space<vmem>>, vector<8x8xf32>
    %17 = arith.addf %15, %16 : vector<8x8xf32>
    %cst_14 = arith.constant dense<0xFF800000> : vector<8xf32>
    %18 = vector.multi_reduction <maximumf>, %17, %cst_14 [1] : vector<8x8xf32> to vector<8xf32>
    %19 = vector.shape_cast %18 : vector<8xf32> to vector<8x1xf32>
    %20 = vector.broadcast %19 : vector<8x1xf32> to vector<8x8xf32>
    %21 = arith.subf %17, %20 : vector<8x8xf32>
    %22 = math.exp %21 : vector<8x8xf32>
    %cst_15 = arith.constant dense<0.000000e+00> : vector<8xf32>
    %23 = vector.multi_reduction <add>, %22, %cst_15 [1] : vector<8x8xf32> to vector<8xf32>
    %24 = vector.shape_cast %23 : vector<8xf32> to vector<8x1xf32>
    %25 = tpu.reciprocal %24 {approx = true} : vector<8x1xf32> -> vector<8x1xf32>
    %26 = vector.broadcast %25 : vector<8x1xf32> to vector<8x8xf32>
    %27 = arith.mulf %22, %26 : vector<8x8xf32>
    %28 = arith.truncf %27 : vector<8x8xf32> to vector<8x8xbf16>
    %c0_16 = arith.constant 0 : index
    %c0_17 = arith.constant 0 : index
    %29 = vector.load %arg14[%c0_16, %c0_17] : memref<8x8xf32, #tpu.memory_space<vmem>>, vector<8x8xf32>
    %30 = arith.truncf %29 : vector<8x8xf32> to vector<8x8xbf16>
    %cst_18 = arith.constant dense<0.000000e+00> : vector<8x8xf32>
    %31 = tpu.matmul %28, %30, %cst_18 {dimension_numbers = #tpu.dot_dimension_numbers<[1], [0], [0], [1], [0, 0, 1, 1], [], []>} : vector<8x8xbf16>, vector<8x8xbf16>, vector<8x8xf32> -> vector<8x8xf32>
    %c0_19 = arith.constant 0 : index
    %c0_20 = arith.constant 0 : index
    %c0_21 = arith.constant 0 : index
    %c0_22 = arith.constant 0 : index
    %32 = vector.load %arg12[%c0_19, %c0_20, %c0_21, %c0_22] : memref<1x1x8x8xf32, #tpu.memory_space<vmem>>, vector<1x1x8x8xf32>
    %33 = vector.shape_cast %32 : vector<1x1x8x8xf32> to vector<8x8xf32>
    %34 = vector.shape_cast %31 : vector<8x8xf32> to vector<1x1x8x8xf32>
    tpu.vector_store %arg12[%c0_19, %c0_20, %c0_21, %c0_22], %34 {strides = array<i32>} : memref<1x1x8x8xf32, #tpu.memory_space<vmem>>, vector<1x1x8x8xf32>,
    return
  }
  func.func @transform_0(%arg0: i32, %arg1: i32, %arg2: i32) -> (i32, i32, i32) {
    %c0_i32 = arith.constant 0 : i32
    %c0_i32_0 = arith.constant 0 : i32
    return %arg0, %arg2, %c0_i32 : i32, i32, i32
  }
  func.func @transform_1(%arg0: i32, %arg1: i32, %arg2: i32) -> (i32, i32, i32) {
    %c0_i32 = arith.constant 0 : i32
    %c0_i32_0 = arith.constant 0 : i32
    %c0_i32_1 = arith.constant 0 : i32
    return %arg0, %c0_i32, %c0_i32_0 : i32, i32, i32
  }
  func.func @transform_2(%arg0: i32, %arg1: i32, %arg2: i32) -> (i32, i32, i32) {
    %c0_i32 = arith.constant 0 : i32
    %c0_i32_0 = arith.constant 0 : i32
    %c0_i32_1 = arith.constant 0 : i32
    return %arg1, %c0_i32, %c0_i32_0 : i32, i32, i32
  }
  func.func @transform_3(%arg0: i32, %arg1: i32, %arg2: i32) -> (i32, i32, i32) {
    %c0_i32 = arith.constant 0 : i32
    %c0_i32_0 = arith.constant 0 : i32
    %c0_i32_1 = arith.constant 0 : i32
    return %arg1, %c0_i32, %c0_i32_0 : i32, i32, i32
  }
  func.func @transform_4(%arg0: i32, %arg1: i32, %arg2: i32) -> (i32, i32, i32) {
    %c0_i32 = arith.constant 0 : i32
    %c0_i32_0 = arith.constant 0 : i32
    %c0_i32_1 = arith.constant 0 : i32
    return %arg1, %c0_i32, %c0_i32_0 : i32, i32, i32
  }
  func.func @transform_5(%arg0: i32, %arg1: i32, %arg2: i32) -> (i32, i32, i32) {
    %c0_i32 = arith.constant 0 : i32
    %c0_i32_0 = arith.constant 0 : i32
    %c0_i32_1 = arith.constant 0 : i32
    return %arg1, %c0_i32, %c0_i32_0 : i32, i32, i32
  }
  func.func @transform_6(%arg0: i32, %arg1: i32, %arg2: i32) -> (i32, i32, i32) {
    %c0_i32 = arith.constant 0 : i32
    %c0_i32_0 = arith.constant 0 : i32
    %c0_i32_1 = arith.constant 0 : i32
    return %arg1, %c0_i32, %c0_i32_0 : i32, i32, i32
  }
  func.func @transform_7(%arg0: i32, %arg1: i32, %arg2: i32) -> (i32, i32, i32) {
    %c0_i32 = arith.constant 0 : i32
    %c0_i32_0 = arith.constant 0 : i32
    %c0_i32_1 = arith.constant 0 : i32
    return %arg1, %c0_i32, %c0_i32_0 : i32, i32, i32
  }
  func.func @transform_8(%arg0: i32, %arg1: i32, %arg2: i32) -> (i32, i32) {
    %c0_i32 = arith.constant 0 : i32
    %c0_i32_0 = arith.constant 0 : i32
    return %arg2, %c0_i32 : i32, i32
  }
  func.func @transform_9(%arg0: i32, %arg1: i32, %arg2: i32) -> (i32, i32, i32, i32) {
    %c0_i32 = arith.constant 0 : i32
    %c0_i32_0 = arith.constant 0 : i32
    return %arg0, %arg1, %arg2, %c0_i32 : i32, i32, i32, i32
  }
}

</mosaic_0001>

<llo_original>
// kernel: tpu_custom_call.1
$region0: #{tpu_custom_call.1}
  #allocation0 [shape = 'u32[]', space=smem, size = 0x4, offset = 0x4, fixed_abs, tag = 'smem constant byte address 0x4 - core index']
  #allocation1 [shape = 'u32[144,128]{1,0:T(1,128)}', space=vmem, size = 0x12000, scoped, tag = 'internal scratch']
  #allocation2 [shape = 'f32[8,8]{1,0:T(8,128)}', space=vmem, size = 0x1000, scoped, tag = 'scratch operand']
  #allocation3 [shape = 'f32[8,8]{1,0:T(8,128)}', space=vmem, size = 0x1000, scoped, tag = 'scratch operand']
  %s0 = inlined_call_operand.vmem [shape: bf16[2,8,64], index: 0, kind: input, shape index: {}]
  %s1 = inlined_call_operand.vmem [shape: bf16[2,8,64], index: 1, kind: input, shape index: {}]
  %s2 = inlined_call_operand.vmem [shape: bf16[8,64,8], index: 2, kind: input, shape index: {}]
  %s3 = inlined_call_operand.vmem [shape: f32[8,1,8], index: 3, kind: input, shape index: {}]
  %s4 = inlined_call_operand.vmem [shape: bf16[8,64,8], index: 4, kind: input, shape index: {}]
  %s5 = inlined_call_operand.vmem [shape: f32[8,1,8], index: 5, kind: input, shape index: {}]
  %s6 = inlined_call_operand.vmem [shape: bf16[8,64,8], index: 6, kind: input, shape index: {}]
  %s7 = inlined_call_operand.vmem [shape: f32[8,1,8], index: 7, kind: input, shape index: {}]
  %s8 = inlined_call_operand.vmem [shape: f32[8,8], index: 8, kind: input, shape index: {}]
  %s9 = inlined_call_operand.hbm [shape: f32[2,8,8,8], index: 9, kind: output, shape index: {}]
  %s10 = sld [smem:[#allocation0]]
  $region73: #{tpu_custom_call.1} parent=0
    _
  %s12 = ssub.s32 1, %s10
  %s13 = scalar_select 0, %s12, %s10
  $region1: #{tpu_custom_call.1} parent=0
    #allocation4 [shape = 'u8[8192]{0}', space=vmem, size = 0x2000, scoped, tag = 'output window, operand 0']
    #allocation5 [shape = 's32[2]{0}', space=sflag, size = 0x8, scoped, tag = 'scoped memory for tpu_custom_call.1']
    %14 = vsyncpa [#allocation5], 0
    %s15 = scalar_lea.sflag [#allocation5], 1
    %16 = vsyncpa %s15, 0
    loop: start=0, step=1, limit=18
    $region2: #{tpu_custom_call.1} parent=1 // loop_pre_header
      _
    $region3: #{tpu_custom_call.1} parent=1 // loop_header
      %s18 = sphi 0, %s22
      %p19 = scmp.ge.s32.totalorder %s18, 18
      %s25 = sphi 0, %s44
      %s26 = sphi 0, %s40
      %s27 = sphi 0, %s36
      %s28 = sphi 0, %s25
      %s29 = sphi 0, %s26
      %s30 = sphi 0, %s27
      %s31 = sphi 0, %s28
      %s32 = sphi 0, %s29
      %s33 = sphi 0, %s30
      %s49 = sphi 0, %s51
      %s52 = sphi 0, %s49
      %s53 = sphi 0, %s52
      %s69 = sphi 0, %s53
      %s75 = sphi 0, %s77
      %s78 = sphi 0, %s75
      %s79 = sphi 0, %s78
      %s95 = sphi 0, %s79
      %s101 = sphi 0, %s103
      %s104 = sphi 0, %s101
      %s105 = sphi 0, %s104
      %s121 = sphi 0, %s105
      %s127 = sphi 0, %s129
      %s130 = sphi 0, %s127
      %s131 = sphi 0, %s130
      %s147 = sphi 0, %s131
      %s153 = sphi 0, %s155
      %s156 = sphi 0, %s153
      %s157 = sphi 0, %s156
      %s173 = sphi 0, %s157
      %s179 = sphi 0, %s181
      %s182 = sphi 0, %s179
      %s183 = sphi 0, %s182
      %s199 = sphi 0, %s183
      %s205 = sphi 0, %s207
      %s208 = sphi 0, %s205
      %s209 = sphi 0, %s208
      %s225 = sphi 0, %s209
      %s231 = sphi 0, %s233
      %s234 = sphi 0, %s231
      %s235 = sphi 0, %s234
      %s251 = sphi 0, %s235
      %s257 = sphi 0, %s259
      %s260 = sphi 0, %s257
      %s261 = sphi 0, %s260
      %s277 = sphi 0, %s261
      %s287 = sphi 0, %s289
      %s290 = sphi 0, %s287
      %s291 = sphi 0, %s290
      %s307 = sphi 0, %s291
    $region4: #{tpu_custom_call.1} parent=1 // loop_header_branch
      %21 = sbr.rel (%p19) target = $region8
    $region5: #{tpu_custom_call.1} parent=1 // loop_body
      %s23 = ssub.s32 %s18, 1
      %s24 = ssub.s32 %s18, 2
      %s34 = sadd.s32 1, %s27
      %p35 = scmp.ge.s32.totalorder %s34, 1
      %s36 = scalar_select %p35, 0, %s34
      %s37 = sadd.s32 1, %s26
      %s38 = scalar_select %p35, %s37, %s26
      %p39 = scmp.ge.s32.totalorder %s38, 8
      %s40 = scalar_select %p39, 0, %s38
      %s41 = sadd.s32 1, %s25
      %s42 = scalar_select %p39, %s41, %s25
      %p43 = scmp.ge.s32.totalorder %s42, 2
      %s44 = scalar_select %p43, 0, %s42
      %s45 = ssub.s32 %s25, %s44
      %s46 = ssub.s32 %s27, %s36
      %s47 = sor.u32 %s45, %s46
      %p48 = scmp.eq.s32.totalorder %s47, 0
      %s50 = sadd.s32 %s49, 1
      %s51 = scalar_select %p48, %s49, %s50
      %p54 = pneg %p48
      %p55 = scmp.eq.s32.totalorder %s18, 15
      %p56 = por %p54, %p55
      %p57 = scmp.ne.s32.totalorder %s49, %s52
      %p58 = scmp.eq.s32.totalorder %s18, 0
      %p59 = por %p57, %p58
      %p60 = scmp.ne.s32.totalorder %s49, %s52
      %p61 = scmp.eq.s32.totalorder %s23, 15
      %p62 = por %p60, %p61
      %p63 = scmp.ne.s32.totalorder %s52, %s53
      %p64 = scmp.eq.s32.totalorder %s23, 0
      %p65 = por %p63, %p64
      %p66 = scmp.ne.s32.totalorder %s52, %s53
      %p67 = scmp.eq.s32.totalorder %s24, 15
      %p68 = por %p66, %p67
      %p70 = scmp.ne.s32.totalorder %s53, %s69
      %p71 = scmp.eq.s32.totalorder %s24, 0
      %p72 = por %p70, %p71
      %s73 = ssub.s32 %s25, %s44
      %p74 = scmp.eq.s32.totalorder %s73, 0
      %s76 = sadd.s32 %s75, 1
      %s77 = scalar_select %p74, %s75, %s76
      %p80 = pneg %p74
      %p81 = scmp.eq.s32.totalorder %s18, 15
      %p82 = por %p80, %p81
      %p83 = scmp.ne.s32.totalorder %s75, %s78
      %p84 = scmp.eq.s32.totalorder %s18, 0
      %p85 = por %p83, %p84
      %p86 = scmp.ne.s32.totalorder %s75, %s78
      %p87 = scmp.eq.s32.totalorder %s23, 15
      %p88 = por %p86, %p87
      %p89 = scmp.ne.s32.totalorder %s78, %s79
      %p90 = scmp.eq.s32.totalorder %s23, 0
      %p91 = por %p89, %p90
      %p92 = scmp.ne.s32.totalorder %s78, %s79
      %p93 = scmp.eq.s32.totalorder %s24, 15
      %p94 = por %p92, %p93
      %p96 = scmp.ne.s32.totalorder %s79, %s95
      %p97 = scmp.eq.s32.totalorder %s24, 0
      %p98 = por %p96, %p97
      %s99 = ssub.s32 %s26, %s40
      %p100 = scmp.eq.s32.totalorder %s99, 0
      %s102 = sadd.s32 %s101, 1
      %s103 = scalar_select %p100, %s101, %s102
      %p106 = pneg %p100
      %p107 = scmp.eq.s32.totalorder %s18, 15
      %p108 = por %p106, %p107
      %p109 = scmp.ne.s32.totalorder %s101, %s104
      %p110 = scmp.eq.s32.totalorder %s18, 0
      %p111 = por %p109, %p110
      %p112 = scmp.ne.s32.totalorder %s101, %s104
      %p113 = scmp.eq.s32.totalorder %s23, 15
      %p114 = por %p112, %p113
      %p115 = scmp.ne.s32.totalorder %s104, %s105
      %p116 = scmp.eq.s32.totalorder %s23, 0
      %p117 = por %p115, %p116
      %p118 = scmp.ne.s32.totalorder %s104, %s105
      %p119 = scmp.eq.s32.totalorder %s24, 15
      %p120 = por %p118, %p119
      %p122 = scmp.ne.s32.totalorder %s105, %s121
      %p123 = scmp.eq.s32.totalorder %s24, 0
      %p124 = por %p122, %p123
      %s125 = ssub.s32 %s26, %s40
      %p126 = scmp.eq.s32.totalorder %s125, 0
      %s128 = sadd.s32 %s127, 1
      %s129 = scalar_select %p126, %s127, %s128
      %p132 = pneg %p126
      %p133 = scmp.eq.s32.totalorder %s18, 15
      %p134 = por %p132, %p133
      %p135 = scmp.ne.s32.totalorder %s127, %s130
      %p136 = scmp.eq.s32.totalorder %s18, 0
      %p137 = por %p135, %p136
      %p138 = scmp.ne.s32.totalorder %s127, %s130
      %p139 = scmp.eq.s32.totalorder %s23, 15
      %p140 = por %p138, %p139
      %p141 = scmp.ne.s32.totalorder %s130, %s131
      %p142 = scmp.eq.s32.totalorder %s23, 0
      %p143 = por %p141, %p142
      %p144 = scmp.ne.s32.totalorder %s130, %s131
      %p145 = scmp.eq.s32.totalorder %s24, 15
      %p146 = por %p144, %p145
      %p148 = scmp.ne.s32.totalorder %s131, %s147
      %p149 = scmp.eq.s32.totalorder %s24, 0
      %p150 = por %p148, %p149
      %s151 = ssub.s32 %s26, %s40
      %p152 = scmp.eq.s32.totalorder %s151, 0
      %s154 = sadd.s32 %s153, 1
      %s155 = scalar_select %p152, %s153, %s154
      %p158 = pneg %p152
      %p159 = scmp.eq.s32.totalorder %s18, 15
      %p160 = por %p158, %p159
      %p161 = scmp.ne.s32.totalorder %s153, %s156
      %p162 = scmp.eq.s32.totalorder %s18, 0
      %p163 = por %p161, %p162
      %p164 = scmp.ne.s32.totalorder %s153, %s156
      %p165 = scmp.eq.s32.totalorder %s23, 15
      %p166 = por %p164, %p165
      %p167 = scmp.ne.s32.totalorder %s156, %s157
      %p168 = scmp.eq.s32.totalorder %s23, 0
      %p169 = por %p167, %p168
      %p170 = scmp.ne.s32.totalorder %s156, %s157
      %p171 = scmp.eq.s32.totalorder %s24, 15
      %p172 = por %p170, %p171
      %p174 = scmp.ne.s32.totalorder %s157, %s173
      %p175 = scmp.eq.s32.totalorder %s24, 0
      %p176 = por %p174, %p175
      %s177 = ssub.s32 %s26, %s40
      %p178 = scmp.eq.s32.totalorder %s177, 0
      %s180 = sadd.s32 %s179, 1
      %s181 = scalar_select %p178, %s179, %s180
      %p184 = pneg %p178
      %p185 = scmp.eq.s32.totalorder %s18, 15
      %p186 = por %p184, %p185
      %p187 = scmp.ne.s32.totalorder %s179, %s182
      %p188 = scmp.eq.s32.totalorder %s18, 0
      %p189 = por %p187, %p188
      %p190 = scmp.ne.s32.totalorder %s179, %s182
      %p191 = scmp.eq.s32.totalorder %s23, 15
      %p192 = por %p190, %p191
      %p193 = scmp.ne.s32.totalorder %s182, %s183
      %p194 = scmp.eq.s32.totalorder %s23, 0
      %p195 = por %p193, %p194
      %p196 = scmp.ne.s32.totalorder %s182, %s183
      %p197 = scmp.eq.s32.totalorder %s24, 15
      %p198 = por %p196, %p197
      %p200 = scmp.ne.s32.totalorder %s183, %s199
      %p201 = scmp.eq.s32.totalorder %s24, 0
      %p202 = por %p200, %p201
      %s203 = ssub.s32 %s26, %s40
      %p204 = scmp.eq.s32.totalorder %s203, 0
      %s206 = sadd.s32 %s205, 1
      %s207 = scalar_select %p204, %s205, %s206
      %p210 = pneg %p204
      %p211 = scmp.eq.s32.totalorder %s18, 15
      %p212 = por %p210, %p211
      %p213 = scmp.ne.s32.totalorder %s205, %s208
      %p214 = scmp.eq.s32.totalorder %s18, 0
      %p215 = por %p213, %p214
      %p216 = scmp.ne.s32.totalorder %s205, %s208
      %p217 = scmp.eq.s32.totalorder %s23, 15
      %p218 = por %p216, %p217
      %p219 = scmp.ne.s32.totalorder %s208, %s209
      %p220 = scmp.eq.s32.totalorder %s23, 0
      %p221 = por %p219, %p220
      %p222 = scmp.ne.s32.totalorder %s208, %s209
      %p223 = scmp.eq.s32.totalorder %s24, 15
      %p224 = por %p222, %p223
      %p226 = scmp.ne.s32.totalorder %s209, %s225
      %p227 = scmp.eq.s32.totalorder %s24, 0
      %p228 = por %p226, %p227
      %s229 = ssub.s32 %s26, %s40
      %p230 = scmp.eq.s32.totalorder %s229, 0
      %s232 = sadd.s32 %s231, 1
      %s233 = scalar_select %p230, %s231, %s232
      %p236 = pneg %p230
      %p237 = scmp.eq.s32.totalorder %s18, 15
      %p238 = por %p236, %p237
      %p239 = scmp.ne.s32.totalorder %s231, %s234
      %p240 = scmp.eq.s32.totalorder %s18, 0
      %p241 = por %p239, %p240
      %p242 = scmp.ne.s32.totalorder %s231, %s234
      %p243 = scmp.eq.s32.totalorder %s23, 15
      %p244 = por %p242, %p243
      %p245 = scmp.ne.s32.totalorder %s234, %s235
      %p246 = scmp.eq.s32.totalorder %s23, 0
      %p247 = por %p245, %p246
      %p248 = scmp.ne.s32.totalorder %s234, %s235
      %p249 = scmp.eq.s32.totalorder %s24, 15
      %p250 = por %p248, %p249
      %p252 = scmp.ne.s32.totalorder %s235, %s251
      %p253 = scmp.eq.s32.totalorder %s24, 0
      %p254 = por %p252, %p253
      %s255 = ssub.s32 %s27, %s36
      %p256 = scmp.eq.s32.totalorder %s255, 0
      %s258 = sadd.s32 %s257, 1
      %s259 = scalar_select %p256, %s257, %s258
      %p262 = pneg %p256
      %p263 = scmp.eq.s32.totalorder %s18, 15
      %p264 = por %p262, %p263
      %p265 = scmp.ne.s32.totalorder %s257, %s260
      %p266 = scmp.eq.s32.totalorder %s18, 0
      %p267 = por %p265, %p266
      %p268 = scmp.ne.s32.totalorder %s257, %s260
      %p269 = scmp.eq.s32.totalorder %s23, 15
      %p270 = por %p268, %p269
      %p271 = scmp.ne.s32.totalorder %s260, %s261
      %p272 = scmp.eq.s32.totalorder %s23, 0
      %p273 = por %p271, %p272
      %p274 = scmp.ne.s32.totalorder %s260, %s261
      %p275 = scmp.eq.s32.totalorder %s24, 15
      %p276 = por %p274, %p275
      %p278 = scmp.ne.s32.totalorder %s261, %s277
      %p279 = scmp.eq.s32.totalorder %s24, 0
      %p280 = por %p278, %p279
      %s281 = ssub.s32 %s25, %s44
      %s282 = ssub.s32 %s26, %s40
      %s283 = sor.u32 %s281, %s282
      %s284 = ssub.s32 %s27, %s36
      %s285 = sor.u32 %s283, %s284
      %p286 = scmp.eq.s32.totalorder %s285, 0
      %s288 = sadd.s32 %s287, 1
      %s289 = scalar_select %p286, %s287, %s288
      %p292 = pneg %p286
      %p293 = scmp.eq.s32.totalorder %s18, 15
      %p294 = por %p292, %p293
      %p295 = scmp.ne.s32.totalorder %s287, %s290
      %p296 = scmp.eq.s32.totalorder %s18, 0
      %p297 = por %p295, %p296
      %p298 = scmp.ne.s32.totalorder %s287, %s290
      %p299 = scmp.eq.s32.totalorder %s23, 15
      %p300 = por %p298, %p299
      %p301 = scmp.ne.s32.totalorder %s290, %s291
      %p302 = scmp.eq.s32.totalorder %s23, 0
      %p303 = por %p301, %p302
      %p304 = scmp.ne.s32.totalorder %s290, %s291
      %p305 = scmp.eq.s32.totalorder %s24, 15
      %p306 = por %p304, %p305
      %p308 = scmp.ne.s32.totalorder %s291, %s307
      %p309 = scmp.eq.s32.totalorder %s24, 0
      %p310 = por %p308, %p309
      %p311 = scmp.le.s32.totalorder 1, %s18
      %p312 = scmp.lt.s32.totalorder %s18, 17
      %p313 = pnand %p311, %p312
      %p314 = pneg %p313
      // Predicated region
      $region9: #{tpu_custom_call.1} parent=5 // pred_check
        _
      $region10: #{tpu_custom_call.1} parent=5 // pred_check_branch
        %316 = sbr.rel (%p313) target = $region12
      $region11: #{tpu_custom_call.1} parent=5 // pred_region
        %s317 = ssub.s32 %s18, 1
        // Predicated region
        $region13: #{tpu_custom_call.1} parent=11 // pred_check
          %p318 = pneg %p273
        $region14: #{tpu_custom_call.1} parent=11 // pred_check_branch
          %320 = sbr.rel (%p318) target = $region16
        $region15: #{tpu_custom_call.1} parent=11 // pred_region
          %p321 = scmp.lt.s32.totalorder %s30, 0
          %s322 = scalar_select %p321, %s30, 0
          %s323 = smul.addr %s322, 8
          %s324 = scalar_lea.vmem %s8, %s323
        $region16: #{tpu_custom_call.1} parent=11 // pred_fallthru
          _
      $region12: #{tpu_custom_call.1} parent=5 // pred_fallthru
        _
      %p325 = scmp.lt.s32.totalorder %s18, 16
      // Predicated region
      $region17: #{tpu_custom_call.1} parent=5 // pred_check
        %p326 = pneg %p325
      $region18: #{tpu_custom_call.1} parent=5 // pred_check_branch
        %328 = sbr.rel (%p326) target = $region20
      $region19: #{tpu_custom_call.1} parent=5 // pred_region
        // Predicated region
        $region21: #{tpu_custom_call.1} parent=19 // pred_check
          %p329 = pneg %p59
        $region22: #{tpu_custom_call.1} parent=19 // pred_check_branch
          %331 = sbr.rel (%p329) target = $region24
        $region23: #{tpu_custom_call.1} parent=19 // pred_region
          %p332 = scmp.lt.s32.totalorder %s25, 1
          %s333 = scalar_select %p332, %s25, 1
          %p334 = scmp.lt.s32.totalorder %s27, 0
          %s335 = scalar_select %p334, %s27, 0
          %s336 = sadd.s32 %s335, %s333
          %s337 = smul.addr %s336, 4
          %s338 = scalar_lea.vmem %s0, %s337
        $region24: #{tpu_custom_call.1} parent=19 // pred_fallthru
          _
        // Predicated region
        $region25: #{tpu_custom_call.1} parent=19 // pred_check
          %p339 = pneg %p85
        $region26: #{tpu_custom_call.1} parent=19 // pred_check_branch
          %341 = sbr.rel (%p339) target = $region28
        $region27: #{tpu_custom_call.1} parent=19 // pred_region
          %p342 = scmp.lt.s32.totalorder %s25, 1
          %s343 = scalar_select %p342, %s25, 1
          %s344 = smul.addr %s343, 4
          %s345 = scalar_lea.vmem %s1, %s344
        $region28: #{tpu_custom_call.1} parent=19 // pred_fallthru
          _
        // Predicated region
        $region29: #{tpu_custom_call.1} parent=19 // pred_check
          %p346 = pneg %p111
        $region30: #{tpu_custom_call.1} parent=19 // pred_check_branch
          %348 = sbr.rel (%p346) target = $region32
        $region31: #{tpu_custom_call.1} parent=19 // pred_region
          %p349 = scmp.lt.s32.totalorder %s26, 7
          %s350 = scalar_select %p349, %s26, 7
          %s351 = smul.addr %s350, 8
          %s352 = smul.addr %s351, 4
          %s353 = scalar_lea.vmem %s2, %s352
        $region32: #{tpu_custom_call.1} parent=19 // pred_fallthru
          _
        // Predicated region
        $region33: #{tpu_custom_call.1} parent=19 // pred_check
          %p354 = pneg %p137
        $region34: #{tpu_custom_call.1} parent=19 // pred_check_branch
          %356 = sbr.rel (%p354) target = $region36
        $region35: #{tpu_custom_call.1} parent=19 // pred_region
          %p357 = scmp.lt.s32.totalorder %s26, 7
          %s358 = scalar_select %p357, %s26, 7
          %s359 = scalar_lea.vmem %s3, %s358
        $region36: #{tpu_custom_call.1} parent=19 // pred_fallthru
          _
        // Predicated region
        $region37: #{tpu_custom_call.1} parent=19 // pred_check
          %p360 = pneg %p163
        $region38: #{tpu_custom_call.1} parent=19 // pred_check_branch
          %362 = sbr.rel (%p360) target = $region40
        $region39: #{tpu_custom_call.1} parent=19 // pred_region
          %p363 = scmp.lt.s32.totalorder %s26, 7
          %s364 = scalar_select %p363, %s26, 7
          %s365 = smul.addr %s364, 8
          %s366 = smul.addr %s365, 4
          %s367 = scalar_lea.vmem %s4, %s366
        $region40: #{tpu_custom_call.1} parent=19 // pred_fallthru
          _
        // Predicated region
        $region41: #{tpu_custom_call.1} parent=19 // pred_check
          %p368 = pneg %p189
        $region42: #{tpu_custom_call.1} parent=19 // pred_check_branch
          %370 = sbr.rel (%p368) target = $region44
        $region43: #{tpu_custom_call.1} parent=19 // pred_region
          %p371 = scmp.lt.s32.totalorder %s26, 7
          %s372 = scalar_select %p371, %s26, 7
          %s373 = scalar_lea.vmem %s5, %s372
        $region44: #{tpu_custom_call.1} parent=19 // pred_fallthru
          _
        // Predicated region
        $region45: #{tpu_custom_call.1} parent=19 // pred_check
          %p374 = pneg %p215
        $region46: #{tpu_custom_call.1} parent=19 // pred_check_branch
          %376 = sbr.rel (%p374) target = $region48
        $region47: #{tpu_custom_call.1} parent=19 // pred_region
          %p377 = scmp.lt.s32.totalorder %s26, 7
          %s378 = scalar_select %p377, %s26, 7
          %s379 = smul.addr %s378, 8
          %s380 = smul.addr %s379, 4
          %s381 = scalar_lea.vmem %s6, %s380
        $region48: #{tpu_custom_call.1} parent=19 // pred_fallthru
          _
        // Predicated region
        $region49: #{tpu_custom_call.1} parent=19 // pred_check
          %p382 = pneg %p241
        $region50: #{tpu_custom_call.1} parent=19 // pred_check_branch
          %384 = sbr.rel (%p382) target = $region52
        $region51: #{tpu_custom_call.1} parent=19 // pred_region
          %p385 = scmp.lt.s32.totalorder %s26, 7
          %s386 = scalar_select %p385, %s26, 7
          %s387 = scalar_lea.vmem %s7, %s386
        $region52: #{tpu_custom_call.1} parent=19 // pred_fallthru
          _
      $region20: #{tpu_custom_call.1} parent=5 // pred_fallthru
        _
      %p388 = scmp.le.s32.totalorder 1, %s18
      %p389 = scmp.lt.s32.totalorder %s18, 17
      %p390 = pnand %p388, %p389
      %p391 = pneg %p390
      // Predicated region
      $region53: #{tpu_custom_call.1} parent=5 // pred_check
        _
      $region54: #{tpu_custom_call.1} parent=5 // pred_check_branch
        %393 = sbr.rel (%p390) target = $region56
      $region55: #{tpu_custom_call.1} parent=5 // pred_region
        %s394 = ssub.s32 %s18, 1
        %p395 = scmp.lt.s32.totalorder %s28, 1
        %s396 = scalar_select %p395, %s28, 1
        %p397 = scmp.lt.s32.totalorder %s30, 0
        %s398 = scalar_select %p397, %s30, 0
        %s399 = sadd.s32 %s398, %s396
        %s400 = smul.addr %s399, 4
        %s401 = scalar_lea.vmem %s0, %s400
        %p402 = pneg %p65
        %p403 = pneg %p62
        %p404 = scmp.lt.s32.totalorder %s28, 1
        %s405 = scalar_select %p404, %s28, 1
        %s406 = smul.addr %s405, 4
        %s407 = scalar_lea.vmem %s1, %s406
        %p408 = pneg %p91
        %p409 = pneg %p88
        %p410 = scmp.lt.s32.totalorder %s29, 7
        %s411 = scalar_select %p410, %s29, 7
        %s412 = smul.addr %s411, 8
        %s413 = smul.addr %s412, 4
        %s414 = scalar_lea.vmem %s2, %s413
        %p415 = pneg %p117
        %p416 = pneg %p114
        %p417 = scmp.lt.s32.totalorder %s29, 7
        %s418 = scalar_select %p417, %s29, 7
        %s419 = scalar_lea.vmem %s3, %s418
        %p420 = pneg %p143
        %p421 = pneg %p140
        %p422 = scmp.lt.s32.totalorder %s29, 7
        %s423 = scalar_select %p422, %s29, 7
        %s424 = smul.addr %s423, 8
        %s425 = smul.addr %s424, 4
        %s426 = scalar_lea.vmem %s4, %s425
        %p427 = pneg %p169
        %p428 = pneg %p166
        %p429 = scmp.lt.s32.totalorder %s29, 7
        %s430 = scalar_select %p429, %s29, 7
        %s431 = scalar_lea.vmem %s5, %s430
        %p432 = pneg %p195
        %p433 = pneg %p192
        %p434 = scmp.lt.s32.totalorder %s29, 7
        %s435 = scalar_select %p434, %s29, 7
        %s436 = smul.addr %s435, 8
        %s437 = smul.addr %s436, 4
        %s438 = scalar_lea.vmem %s6, %s437
        %p439 = pneg %p221
        %p440 = pneg %p218
        %p441 = scmp.lt.s32.totalorder %s29, 7
        %s442 = scalar_select %p441, %s29, 7
        %s443 = scalar_lea.vmem %s7, %s442
        %p444 = pneg %p247
        %p445 = pneg %p244
        %p446 = scmp.lt.s32.totalorder %s30, 0
        %s447 = scalar_select %p446, %s30, 0
        %s448 = smul.addr %s447, 8
        %s449 = scalar_lea.vmem %s8, %s448
        %p450 = pneg %p273
        %p451 = pneg %p270
        %p452 = pneg %p303
        %p453 = pneg %p300
        %s454 = sand.u32 %s290, 1
        %s455 = scalar_lea.sflag [#allocation5], %s454
        %s456 = sand.u32 %s290, 1
        %s457 = smul.addr %s456, 8
        %s458 = scalar_lea.vmem [#allocation4], %s457
        %p459 = scmp.lt.s32.totalorder %s28, 1
        %s460 = scalar_select %p459, %s28, 1
        %p461 = scmp.lt.s32.totalorder %s30, 0
        %s462 = scalar_select %p461, %s30, 0
        %s463 = sadd.s32 %s462, %s460
        %s464 = smul.addr %s463, 4
        %s465 = scalar_lea.vmem %s0, %s464
        %p466 = scmp.lt.s32.totalorder %s28, 1
        %s467 = scalar_select %p466, %s28, 1
        %s468 = smul.addr %s467, 4
        %s469 = scalar_lea.vmem %s1, %s468
        %p470 = scmp.lt.s32.totalorder %s29, 7
        %s471 = scalar_select %p470, %s29, 7
        %s472 = smul.addr %s471, 8
        %s473 = smul.addr %s472, 4
        %s474 = scalar_lea.vmem %s2, %s473
        %p475 = scmp.lt.s32.totalorder %s29, 7
        %s476 = scalar_select %p475, %s29, 7
        %s477 = scalar_lea.vmem %s3, %s476
        %p478 = scmp.lt.s32.totalorder %s29, 7
        %s479 = scalar_select %p478, %s29, 7
        %s480 = smul.addr %s479, 8
        %s481 = smul.addr %s480, 4
        %s482 = scalar_lea.vmem %s4, %s481
        %p483 = scmp.lt.s32.totalorder %s29, 7
        %s484 = scalar_select %p483, %s29, 7
        %s485 = scalar_lea.vmem %s5, %s484
        %p486 = scmp.lt.s32.totalorder %s29, 7
        %s487 = scalar_select %p486, %s29, 7
        %s488 = smul.addr %s487, 8
        %s489 = smul.addr %s488, 4
        %s490 = scalar_lea.vmem %s6, %s489
        %p491 = scmp.lt.s32.totalorder %s29, 7
        %s492 = scalar_select %p491, %s29, 7
        %s493 = scalar_lea.vmem %s7, %s492
        %p494 = scmp.lt.s32.totalorder %s30, 0
        %s495 = scalar_select %p494, %s30, 0
        %s496 = smul.addr %s495, 8
        %s497 = scalar_lea.vmem %s8, %s496
        %p499 = scmp.eq.s32.totalorder %s30, 0
        // Predicated region
        $region57: #{tpu_custom_call.1} parent=55 // pred_check
          %p500 = pneg %p499
        $region58: #{tpu_custom_call.1} parent=55 // pred_check_branch
          %502 = sbr.rel (%p500) target = $region60
        $region59: #{tpu_custom_call.1} parent=55 // pred_region
          %v503 = vld [vmem:[%s469] sm:$0xf]
          %v504 = vld [vmem:[%s482] sm:$0xf]
          %v505 = vld [vmem:[%s482 + $0x4] sm:$0xf]
          %v506 = vld [vmem:[%s482 + $0x8] sm:$0xf]
          %v507 = vld [vmem:[%s482 + $0xc] sm:$0xf]
          %v508 = vld [vmem:[%s482 + $0x10] sm:$0xf]
          %v509 = vld [vmem:[%s482 + $0x14] sm:$0xf]
          %v510 = vld [vmem:[%s482 + $0x18] sm:$0xf]
          %v511 = vld [vmem:[%s482 + $0x1c] sm:$0xf]
          %v512 = vld [vmem:[%s485] sm:$0x1]
          %v514 = vlaneseq
          %v515 = vshrl.u32 %v514, 7
          %v516 = vsub.s32 0, %v515
          %v517 = vrot.slane %v512, %v516
          %v527 = vunpack.c.l.b16 %v504
          %v528 = vunpack.c.l.b16 %v505
          %v529 = vunpack.c.l.b16 %v506
          %v530 = vunpack.c.l.b16 %v507
          %v531 = vunpack.c.l.b16 %v508
          %v532 = vunpack.c.l.b16 %v509
          %v533 = vunpack.c.l.b16 %v510
          %v534 = vunpack.c.l.b16 %v511
          %v535 = vpack.c.b16 %v528, %v527
          %v536 = vpack.c.b16 %v530, %v529
          %v537 = vpack.c.b16 %v532, %v531
          %v538 = vpack.c.b16 %v534, %v533
          %vm543 = vcmask 523264
          %v545 = vsel %vm543, %v503, 0
          %547 = vmatprep.subr.bf16.mxu0 0
          %548 = vmatpush1.bf16.msra.mxu0 %v535
          %549 = vmatprep.subr.bf16.mxu0 0
          %550 = vmatpush1.bf16.msra.mxu0 %v536
          %551 = vmatprep.subr.bf16.mxu0 0
          %552 = vmatpush1.bf16.msra.mxu0 %v537
          %553 = vmatprep.subr.bf16.mxu0 0
          %554 = vmatpush1.bf16.msra.mxu0 %v538
          %555 = vmatprep.subr.bf16.mxu0 0
          %556 = vmatpush1.bf16.msra.mxu0 0
          %557 = vmatprep.subr.bf16.mxu0 0
          %558 = vmatpush1.bf16.msra.mxu0 0
          %559 = vmatprep.subr.bf16.mxu0 0
          %560 = vmatpush1.bf16.msra.mxu0 0
          %561 = vmatprep.subr.bf16.mxu0 0
          %562 = vmatpush1.bf16.msra.mxu0 0
          %563 = vmatprep.subr.bf16.mxu0 0
          %564 = vmatpush1.bf16.msra.mxu0 0
          %565 = vmatprep.subr.bf16.mxu0 0
          %566 = vmatpush1.bf16.msra.mxu0 0
          %567 = vmatprep.subr.bf16.mxu0 0
          %568 = vmatpush1.bf16.msra.mxu0 0
          %569 = vmatprep.subr.bf16.mxu0 0
          %570 = vmatpush1.bf16.msra.mxu0 0
          %571 = vmatprep.subr.bf16.mxu0 0
          %572 = vmatpush1.bf16.msra.mxu0 0
          %573 = vmatprep.subr.bf16.mxu0 0
          %574 = vmatpush1.bf16.msra.mxu0 0
          %575 = vmatprep.subr.bf16.mxu0 0
          %576 = vmatpush1.bf16.msra.mxu0 0
          %577 = vmatprep.subr.bf16.mxu0 0
          %578 = vmatpush1.bf16.msra.mxu0 0
          %579 = vmatprep.mubr.bf16.mxu0 0
          %580 = vmatmul.mubr.bf16.gmra.mrb[0].mxu0 %v545
          %v581 = vpop.f32.mrb[0].mxu0
          %v582 = vadd.f32 %v517, %v581
          %v583 = vpop.f32.mrb[0].mxu0
          %v584 = vpop.f32.mrb[0].mxu0
          %v585 = vpop.f32.mrb[0].mxu0
          %586 = vdwg.mxu0
          %v587 = vld [vmem:[%s490] sm:$0xf]
          %v588 = vld [vmem:[%s490 + $0x4] sm:$0xf]
          %v589 = vld [vmem:[%s490 + $0x8] sm:$0xf]
          %v590 = vld [vmem:[%s490 + $0xc] sm:$0xf]
          %v591 = vld [vmem:[%s490 + $0x10] sm:$0xf]
          %v592 = vld [vmem:[%s490 + $0x14] sm:$0xf]
          %v593 = vld [vmem:[%s490 + $0x18] sm:$0xf]
          %v594 = vld [vmem:[%s490 + $0x1c] sm:$0xf]
          %v595 = vld [vmem:[%s493] sm:$0x1]
          %v597 = vlaneseq
          %v598 = vshrl.u32 %v597, 7
          %v599 = vsub.s32 0, %v598
          %v600 = vrot.slane %v595, %v599
          %v610 = vunpack.c.l.b16 %v587
          %v611 = vunpack.c.l.b16 %v588
          %v612 = vunpack.c.l.b16 %v589
          %v613 = vunpack.c.l.b16 %v590
          %v614 = vunpack.c.l.b16 %v591
          %v615 = vunpack.c.l.b16 %v592
          %v616 = vunpack.c.l.b16 %v593
          %v617 = vunpack.c.l.b16 %v594
          %v618 = vpack.c.b16 %v611, %v610
          %v619 = vpack.c.b16 %v613, %v612
          %v620 = vpack.c.b16 %v615, %v614
          %v621 = vpack.c.b16 %v617, %v616
          %626 = vmatprep.subr.bf16.mxu0 0
          %627 = vmatpush1.bf16.msra.mxu0 %v618
          %628 = vmatprep.subr.bf16.mxu0 0
          %629 = vmatpush1.bf16.msra.mxu0 %v619
          %630 = vmatprep.subr.bf16.mxu0 0
          %631 = vmatpush1.bf16.msra.mxu0 %v620
          %632 = vmatprep.subr.bf16.mxu0 0
          %633 = vmatpush1.bf16.msra.mxu0 %v621
          %634 = vmatprep.subr.bf16.mxu0 0
          %635 = vmatpush1.bf16.msra.mxu0 0
          %636 = vmatprep.subr.bf16.mxu0 0
          %637 = vmatpush1.bf16.msra.mxu0 0
          %638 = vmatprep.subr.bf16.mxu0 0
          %639 = vmatpush1.bf16.msra.mxu0 0
          %640 = vmatprep.subr.bf16.mxu0 0
          %641 = vmatpush1.bf16.msra.mxu0 0
          %642 = vmatprep.subr.bf16.mxu0 0
          %643 = vmatpush1.bf16.msra.mxu0 0
          %644 = vmatprep.subr.bf16.mxu0 0
          %645 = vmatpush1.bf16.msra.mxu0 0
          %646 = vmatprep.subr.bf16.mxu0 0
          %647 = vmatpush1.bf16.msra.mxu0 0
          %648 = vmatprep.subr.bf16.mxu0 0
          %649 = vmatpush1.bf16.msra.mxu0 0
          %650 = vmatprep.subr.bf16.mxu0 0
          %651 = vmatpush1.bf16.msra.mxu0 0
          %652 = vmatprep.subr.bf16.mxu0 0
          %653 = vmatpush1.bf16.msra.mxu0 0
          %654 = vmatprep.subr.bf16.mxu0 0
          %655 = vmatpush1.bf16.msra.mxu0 0
          %656 = vmatprep.subr.bf16.mxu0 0
          %657 = vmatpush1.bf16.msra.mxu0 0
          %658 = vmatprep.mubr.bf16.mxu0 0
          %659 = vmatmul.mubr.bf16.gmra.mrb[0].mxu0 %v545
          %v660 = vpop.f32.mrb[0].mxu0
          %v661 = vadd.f32 %v600, %v660
          %v662 = vpop.f32.mrb[0].mxu0
          %v663 = vpop.f32.mrb[0].mxu0
          %v664 = vpop.f32.mrb[0].mxu0
          %665 = vdwg.mxu0
          %vm666 = vcmask 64512
          %667 = vst.msk [vmem:[#allocation2] sm:$0xff] %vm666, %v582
          %668 = vst.msk [vmem:[#allocation3] sm:$0xff] %vm666, %v661
        $region60: #{tpu_custom_call.1} parent=55 // pred_fallthru
          _
        %v669 = vld [vmem:[%s465] sm:$0xf]
        %v670 = vld [vmem:[%s474] sm:$0xf]
        %v671 = vld [vmem:[%s474 + $0x4] sm:$0xf]
        %v672 = vld [vmem:[%s474 + $0x8] sm:$0xf]
        %v673 = vld [vmem:[%s474 + $0xc] sm:$0xf]
        %v674 = vld [vmem:[%s474 + $0x10] sm:$0xf]
        %v675 = vld [vmem:[%s474 + $0x14] sm:$0xf]
        %v676 = vld [vmem:[%s474 + $0x18] sm:$0xf]
        %v677 = vld [vmem:[%s474 + $0x1c] sm:$0xf]
        %v678 = vld [vmem:[%s477] sm:$0x1]
        %v680 = vlaneseq
        %v681 = vshrl.u32 %v680, 7
        %v682 = vsub.s32 0, %v681
        %v683 = vrot.slane %v678, %v682
        %v693 = vunpack.c.l.b16 %v670
        %v694 = vunpack.c.l.b16 %v671
        %v695 = vunpack.c.l.b16 %v672
        %v696 = vunpack.c.l.b16 %v673
        %v697 = vunpack.c.l.b16 %v674
        %v698 = vunpack.c.l.b16 %v675
        %v699 = vunpack.c.l.b16 %v676
        %v700 = vunpack.c.l.b16 %v677
        %v701 = vpack.c.b16 %v694, %v693
        %v702 = vpack.c.b16 %v696, %v695
        %v703 = vpack.c.b16 %v698, %v697
        %v704 = vpack.c.b16 %v700, %v699
        %vm709 = vcmask 523264
        %v711 = vsel %vm709, %v669, 0
        %713 = vmatprep.subr.bf16.mxu0 0
        %714 = vmatpush1.bf16.msra.mxu0 %v701
        %715 = vmatprep.subr.bf16.mxu0 0
        %716 = vmatpush1.bf16.msra.mxu0 %v702
        %717 = vmatprep.subr.bf16.mxu0 0
        %718 = vmatpush1.bf16.msra.mxu0 %v703
        %719 = vmatprep.subr.bf16.mxu0 0
        %720 = vmatpush1.bf16.msra.mxu0 %v704
        %721 = vmatprep.subr.bf16.mxu0 0
        %722 = vmatpush1.bf16.msra.mxu0 0
        %723 = vmatprep.subr.bf16.mxu0 0
        %724 = vmatpush1.bf16.msra.mxu0 0
        %725 = vmatprep.subr.bf16.mxu0 0
        %726 = vmatpush1.bf16.msra.mxu0 0
        %727 = vmatprep.subr.bf16.mxu0 0
        %728 = vmatpush1.bf16.msra.mxu0 0
        %729 = vmatprep.subr.bf16.mxu0 0
        %730 = vmatpush1.bf16.msra.mxu0 0
        %731 = vmatprep.subr.bf16.mxu0 0
        %732 = vmatpush1.bf16.msra.mxu0 0
        %733 = vmatprep.subr.bf16.mxu0 0
        %734 = vmatpush1.bf16.msra.mxu0 0
        %735 = vmatprep.subr.bf16.mxu0 0
        %736 = vmatpush1.bf16.msra.mxu0 0
        %737 = vmatprep.subr.bf16.mxu0 0
        %738 = vmatpush1.bf16.msra.mxu0 0
        %739 = vmatprep.subr.bf16.mxu0 0
        %740 = vmatpush1.bf16.msra.mxu0 0
        %741 = vmatprep.subr.bf16.mxu0 0
        %742 = vmatpush1.bf16.msra.mxu0 0
        %743 = vmatprep.subr.bf16.mxu0 0
        %744 = vmatpush1.bf16.msra.mxu0 0
        %745 = vmatprep.mubr.bf16.mxu0 0
        %746 = vmatmul.mubr.bf16.gmra.mrb[0].mxu0 %v711
        %v747 = vpop.f32.mrb[0].mxu0
        %v748 = vadd.f32 %v683, %v747
        %v749 = vpop.f32.mrb[0].mxu0
        %v750 = vpop.f32.mrb[0].mxu0
        %v751 = vpop.f32.mrb[0].mxu0
        %752 = vdwg.mxu0
        %v753 = vpack.c.bf16 %v748, %v748
        %v754 = vld [vmem:[#allocation2] sm:$0xff]
        %v755 = vpack.c.bf16 %v754, %v754
        %v756 = vld [vmem:[%s497] sm:$0xff]
        %vm757 = vcmask 64512
        %v759 = vsel %vm757, %v753, 0
        %v762 = vsel %vm757, %v755, 0
        %764 = vmatprep.subr.bf16.mxu0 0
        %765 = vmatpush1.bf16.xpose.msra.mxu0 %v762
        %766 = vmatprep.subr.bf16.mxu0 0
        %767 = vmatpush1.bf16.xpose.msra.mxu0 0
        %768 = vmatprep.subr.bf16.mxu0 0
        %769 = vmatpush1.bf16.xpose.msra.mxu0 0
        %770 = vmatprep.subr.bf16.mxu0 0
        %771 = vmatpush1.bf16.xpose.msra.mxu0 0
        %772 = vmatprep.subr.bf16.mxu0 0
        %773 = vmatpush1.bf16.xpose.msra.mxu0 0
        %774 = vmatprep.subr.bf16.mxu0 0
        %775 = vmatpush1.bf16.xpose.msra.mxu0 0
        %776 = vmatprep.subr.bf16.mxu0 0
        %777 = vmatpush1.bf16.xpose.msra.mxu0 0
        %778 = vmatprep.subr.bf16.mxu0 0
        %779 = vmatpush1.bf16.xpose.msra.mxu0 0
        %780 = vmatprep.subr.bf16.mxu0 0
        %781 = vmatpush1.bf16.xpose.msra.mxu0 0
        %782 = vmatprep.subr.bf16.mxu0 0
        %783 = vmatpush1.bf16.xpose.msra.mxu0 0
        %784 = vmatprep.subr.bf16.mxu0 0
        %785 = vmatpush1.bf16.xpose.msra.mxu0 0
        %786 = vmatprep.subr.bf16.mxu0 0
        %787 = vmatpush1.bf16.xpose.msra.mxu0 0
        %788 = vmatprep.subr.bf16.mxu0 0
        %789 = vmatpush1.bf16.xpose.msra.mxu0 0
        %790 = vmatprep.subr.bf16.mxu0 0
        %791 = vmatpush1.bf16.xpose.msra.mxu0 0
        %792 = vmatprep.subr.bf16.mxu0 0
        %793 = vmatpush1.bf16.xpose.msra.mxu0 0
        %794 = vmatprep.subr.bf16.mxu0 0
        %795 = vmatpush1.bf16.xpose.msra.mxu0 0
        %796 = vmatprep.mubr.bf16.mxu0 0
        %797 = vmatmul.mubr.bf16.gmra.mrb[0].mxu0 %v759
        %v798 = vpop.f32.mrb[0].mxu0
        %v799 = vadd.f32 %v756, %v798
        %v800 = vpop.f32.mrb[0].mxu0
        %v801 = vpop.f32.mrb[0].mxu0
        %v802 = vpop.f32.mrb[0].mxu0
        %803 = vdwg.mxu0
        %v804 = vsel %vm757, %v799, -inf
        %805 = vmax.xlane.f32.xlu0 %v804
        %v806 = vpop.xlane.xlu0 %805
        %v807 = vsub.f32 %v799, %v806
        %v808 = vmul.f32 %v807, 1.442695
        %v809 = vpow.pop %v808
        %v810 = vsel %vm757, %v809, 0.0
        %811 = vadd.xlane.f32.xlu0 %v810
        %v812 = vpop.xlane.xlu0 %811
        %v813 = vrcp.pop %v812
        %v814 = vmul.f32 %v809, %v813
        %v815 = vpack.c.bf16 %v814, %v814
        %v816 = vld [vmem:[#allocation3] sm:$0xff]
        %v817 = vpack.c.bf16 %v816, %v816
        %v819 = vsel %vm757, %v815, 0
        %vm821 = vcmask 1043456
        %v823 = vsel %vm821, %v817, 0
        %825 = vmatprep.subr.bf16.mxu0 0
        %826 = vmatpush1.bf16.msra.mxu0 %v823
        %827 = vmatprep.subr.bf16.mxu0 0
        %828 = vmatpush1.bf16.msra.mxu0 0
        %829 = vmatprep.subr.bf16.mxu0 0
        %830 = vmatpush1.bf16.msra.mxu0 0
        %831 = vmatprep.subr.bf16.mxu0 0
        %832 = vmatpush1.bf16.msra.mxu0 0
        %833 = vmatprep.subr.bf16.mxu0 0
        %834 = vmatpush1.bf16.msra.mxu0 0
        %835 = vmatprep.subr.bf16.mxu0 0
        %836 = vmatpush1.bf16.msra.mxu0 0
        %837 = vmatprep.subr.bf16.mxu0 0
        %838 = vmatpush1.bf16.msra.mxu0 0
        %839 = vmatprep.subr.bf16.mxu0 0
        %840 = vmatpush1.bf16.msra.mxu0 0
        %841 = vmatprep.subr.bf16.mxu0 0
        %842 = vmatpush1.bf16.msra.mxu0 0
        %843 = vmatprep.subr.bf16.mxu0 0
        %844 = vmatpush1.bf16.msra.mxu0 0
        %845 = vmatprep.subr.bf16.mxu0 0
        %846 = vmatpush1.bf16.msra.mxu0 0
        %847 = vmatprep.subr.bf16.mxu0 0
        %848 = vmatpush1.bf16.msra.mxu0 0
        %849 = vmatprep.subr.bf16.mxu0 0
        %850 = vmatpush1.bf16.msra.mxu0 0
        %851 = vmatprep.subr.bf16.mxu0 0
        %852 = vmatpush1.bf16.msra.mxu0 0
        %853 = vmatprep.subr.bf16.mxu0 0
        %854 = vmatpush1.bf16.msra.mxu0 0
        %855 = vmatprep.subr.bf16.mxu0 0
        %856 = vmatpush1.bf16.msra.mxu0 0
        %857 = vmatprep.mubr.bf16.mxu0 0
        %858 = vmatmul.mubr.bf16.gmra.mrb[0].mxu0 %v819
        %v859 = vpop.f32.mrb[0].mxu0
        %v860 = vadd.f32 0.0, %v859
        %v861 = vpop.f32.mrb[0].mxu0
        %v862 = vpop.f32.mrb[0].mxu0
        %v863 = vpop.f32.mrb[0].mxu0
        %864 = vdwg.mxu0
        %865 = vst.msk [vmem:[%s458] sm:$0xff] %vm757, %v860
        %s866 = sand.u32 %s290, 1
        %s867 = scalar_lea.sflag [#allocation5], %s866
        %s868 = sand.u32 %s290, 1
        %s869 = smul.addr %s868, 8
        %s870 = scalar_lea.vmem [#allocation4], %s869
        // Predicated region
        $region61: #{tpu_custom_call.1} parent=55 // pred_check
          %p871 = pneg %p300
        $region62: #{tpu_custom_call.1} parent=55 // pred_check_branch
          %873 = sbr.rel (%p871) target = $region64
        $region63: #{tpu_custom_call.1} parent=55 // pred_region
          %s875 = ssub.s32 128, 128
          %876 = vsyncadd %s867, %s875
          %s877 = sadd.s32 %s30, %s29
          %s878 = smul.addr %s28, 8
          %s879 = sadd.s32 %s877, %s878
          %s880 = smul.addr %s879, 128
          %s881 = scalar_lea.hbm %s9, %s880
          %s883 = sshll.u32 %s870, 4
          %s884 = int_to_ptr.vmem [resolvable:$true] %s883
          %886 = dma.vmem_to_hbm [thread:$0]  %s884, 128, %s881, %s867
        $region64: #{tpu_custom_call.1} parent=55 // pred_fallthru
          _
      $region56: #{tpu_custom_call.1} parent=5 // pred_fallthru
        _
      %p887 = scmp.le.s32.totalorder 2, %s18
      // Predicated region
      $region65: #{tpu_custom_call.1} parent=5 // pred_check
        %p888 = pneg %p887
      $region66: #{tpu_custom_call.1} parent=5 // pred_check_branch
        %890 = sbr.rel (%p888) target = $region68
      $region67: #{tpu_custom_call.1} parent=5 // pred_region
        %s891 = ssub.s32 %s18, 2
        // Predicated region
        $region69: #{tpu_custom_call.1} parent=67 // pred_check
          %p892 = pneg %p306
        $region70: #{tpu_custom_call.1} parent=67 // pred_check_branch
          %894 = sbr.rel (%p892) target = $region72
        $region71: #{tpu_custom_call.1} parent=67 // pred_region
          %s895 = sand.u32 %s291, 1
          %s896 = scalar_lea.sflag [#allocation5], %s895
          %s897 = sand.u32 %s291, 1
          %s898 = smul.addr %s897, 8
          %s899 = scalar_lea.vmem [#allocation4], %s898
          %900 = dma.done %s896, 128
        $region72: #{tpu_custom_call.1} parent=67 // pred_fallthru
          _
      $region68: #{tpu_custom_call.1} parent=5 // pred_fallthru
        _
    $region6: #{tpu_custom_call.1} parent=1 // loop_footer
      %s22 = sadd.s32 1, %s18
    $region7: #{tpu_custom_call.1} parent=1 // loop_footer_branch
      %17 = sbr.rel target = $region3
    $region8: #{tpu_custom_call.1} parent=1 // loop_exit
      _
    %901 = vsyncpa [#allocation5], 1
    %s902 = scalar_lea.sflag [#allocation5], 1
    %903 = vsyncpa %s902, 1

</llo_original>
